<compile_context>
chip_gen: v7x
topology: tpu7x:2x2x1
jax: 0.10.0
libtpu: 0.0.40
codegen_flags: <defaults>
</compile_context>

<pallas_src>
import functools
import math

import jax
import jax.numpy as jnp
from jax import lax
from jax.experimental import pallas as pl
from jax.experimental.pallas import tpu as pltpu


def _leaky_relu(v):
    return jnp.where(v > 0, v, 0.01 * v)


def _hardsigmoid(v):
    return jnp.clip((v + 3.0) / 6.0, 0.0, 1.0)


def _ds_kernel(xph_ref, dww_ref, dwb_ref, w1_ref, b1_ref, w2_ref, b2_ref,
               pww_ref, pwb_ref, o_ref, *, K, S, Ho, Wo, C, NB, use_se, block_diag):
    """One batch chunk (NB images) per grid step, lane-packed activations.

    xph_ref : (NB, S*S, Hq, Wq*C)  polyphase-split, zero-padded input (compute dtype)
    dww_ref : (K*K, Wo*C)          depthwise weight, BN-scale folded, lane-tiled (f32)
    dwb_ref : (1, Wo*C)            depthwise BN bias, lane-tiled (f32)
    w1/b1/w2/b2                    SE 1x1 convs with bias (f32, tiny)
    pww_ref : (Wo*C, Wo*out_c) block-diag  OR  (C, out_c) plain  (compute dtype)
    pwb_ref : (1, Wo*out_c)        pointwise BN bias, lane-tiled (f32)
    o_ref   : (NB*Ho, Wo*out_c)    lane-dense output slab
    """
    WoC = Wo * C

    # ---- depthwise KxK conv (stride absorbed by the polyphase split), f32 accumulate ----
    dww = dww_ref[...]                                   # loaded once, indexed in-register
    acc = jnp.zeros((NB, Ho, WoC), jnp.float32)
    for kh in range(K):
        hphase, hoff = kh % S, kh // S
        for wp in range(min(S, K)):
            kws = [kw for kw in range(K) if kw % S == wp]
            if not kws:
                continue
            phase = hphase * S + wp
            if len(kws) == 1:
                kw = kws[0]
                patch = xph_ref[:, phase, pl.ds(hoff, Ho), pl.ds((kw // S) * C, WoC)]
                acc = acc + patch * dww[kh * K + kw]
            else:
                # one full-width row load; sibling taps derived by in-register lane
                # slices (moves work from the vld slot to the XLU slot — helps v5e).
                row = xph_ref[:, phase, pl.ds(hoff, Ho), :]
                for kw in kws:
                    off = (kw // S) * C
                    acc = acc + row[:, :, off:off + WoC] * dww[kh * K + kw]
    y = _leaky_relu(acc + dwb_ref[...])                  # folded BN + LeakyReLU (f32)

    # ---- SE (squeeze-excite): tiny tensors, mostly VPU/XLU work ----
    if use_se:
        m = jnp.sum(y, axis=1)                           # (NB, Wo*C) sublane reduce
        if (Wo & (Wo - 1)) == 0:
            cur = WoC                                    # log2(Wo) lane-fold tree
            while cur > C:
                cur //= 2
                m = m[:, :cur] + m[:, cur:2 * cur]
            pooled = m
        else:                                            # generic fallback
            pooled = m[:, 0:C]
            for i in range(1, Wo):
                pooled = pooled + m[:, i * C:(i + 1) * C]
        pooled = pooled * (1.0 / (Ho * Wo))              # global average pool -> (NB, C)
        s = jnp.maximum(
            jnp.dot(pooled, w1_ref[...], preferred_element_type=jnp.float32)
            + b1_ref[...], 0.0)                          # (NB, Cr)
        g = _hardsigmoid(
            jnp.dot(s, w2_ref[...], preferred_element_type=jnp.float32)
            + b2_ref[...])                               # (NB, C)
        # NOTE: lane layout of y is [w-major, c-minor]; keep the tile in lockstep with it.
        y = y * jnp.tile(g, (1, Wo))[:, None, :]

    # ---- pointwise 1x1 conv + folded BN + LeakyReLU ----
    yf = y.reshape(NB * Ho, WoC)                         # merge leading dims only
    pww = pww_ref[...]
    if block_diag:
        # single lane-dense matmul against the block-diagonal (Wo*C, Wo*out_c) weight
        z = jnp.dot(yf.astype(pww.dtype), pww, preferred_element_type=jnp.float32)
    else:
        # large-Wo fallback: per-W-group matmuls against the small (C, out_c) weight,
        # reassembled once so the store stays a full-width lane-dense slab.
        parts = [jnp.dot(yf[:, w * C:(w + 1) * C].astype(pww.dtype), pww,
                         preferred_element_type=jnp.float32) for w in range(Wo)]
        z = jnp.concatenate(parts, axis=-1)
    o_ref[...] = _leaky_relu(z + pwb_ref[...]).astype(o_ref.dtype)


def _choose_batch_chunk(N, Ho, per_image_bytes, fixed_bytes, vmem_budget=24 << 20):
    """Largest NB s.t. (a) >=2 grid steps when N>=2 (v7x has 2 TensorCores),
    (b) the per-step VMEM estimate fits a conservative budget (v7x: 64 MiB physical /
    32 MiB default scoped), (c) stop growing once NB*Ho saturates the 256-wide MXU."""
    min_steps = 2 if N >= 2 else 1
    nb = 1
    for d in range(1, N + 1):
        if N % d:
            continue
        if N // d < min_steps:
            break
        if d * per_image_bytes + fixed_bytes > vmem_budget:
            break
        nb = d
        if d * Ho >= 256:
            break
    return nb


def prepare_params(P, *, in_hw, stride, kernel_size=3, use_se=True,
                   compute_dtype=jnp.bfloat16, block_diag=None):
    """Fold eval-mode BN into the conv weights and pre-lay them out for the kernel.

    Everything here is grid-invariant: call ONCE at parameter-load time, not per forward.
    """
    H, W = in_hw
    K, S = kernel_size, stride
    C = P["dw_w"].shape[2]
    out_c = P["pw_w"].shape[1]
    Cr = P["se_w1"].shape[1]
    pad = (K - 1) // 2
    Ho = (H + 2 * pad - K) // S + 1
    Wo = (W + 2 * pad - K) // S + 1
    cd = jnp.dtype(compute_dtype)

    if block_diag is None:
        # the kron trick costs O(Wo^2) VMEM and Wo x MXU passes — gate it on size
        block_diag = (Wo <= 16) and ((Wo * C) * (Wo * out_c) * cd.itemsize <= (2 << 20))

    dww_lane = jnp.tile(P["dw_w"].reshape(K * K, C) * P["dw_scale"][None, :],
                        (1, Wo)).astype(jnp.float32)
    dwb_lane = jnp.tile(P["dw_bias"][None, :], (1, Wo)).astype(jnp.float32)
    w1 = P["se_w1"].astype(jnp.float32)
    b1 = P["se_b1"].reshape(1, Cr).astype(jnp.float32)
    w2 = P["se_w2"].astype(jnp.float32)
    b2 = P["se_b2"].reshape(1, C).astype(jnp.float32)
    pw_scaled = P["pw_w"] * P["pw_scale"][None, :]
    if block_diag:
        pww = jnp.kron(jnp.eye(Wo, dtype=jnp.float32), pw_scaled).astype(cd)
    else:
        pww = pw_scaled.astype(cd)
    pwb_lane = jnp.tile(P["pw_bias"][None, :], (1, Wo)).astype(jnp.float32)

    weights = tuple(jax.device_put(w) for w in
                    (dww_lane, dwb_lane, w1, b1, w2, b2, pww, pwb_lane))
    meta = dict(K=K, S=S, pad=pad, Ho=Ho, Wo=Wo, C=C, out_c=out_c, Cr=Cr,
                use_se=use_se, block_diag=block_diag, compute_dtype=cd, in_hw=(H, W))
    return dict(weights=weights, meta=meta)


def depthwise_separable_forward_nhwc(x_nhwc, prep, *, out_dtype=jnp.float32):
    """NHWC-in / NHWC-out entry point (no layout transposes)."""
    m = prep["meta"]
    K, S, pad = m["K"], m["S"], m["pad"]
    Ho, Wo, C, out_c = m["Ho"], m["Wo"], m["C"], m["out_c"]
    use_se, block_diag, cd = m["use_se"], m["block_diag"], m["compute_dtype"]
    N, H, W, Cin = x_nhwc.shape
    assert (H, W) == tuple(m["in_hw"]) and Cin == C

    doff = (K - 1) // S
    Hq, Wq = Ho + doff, Wo + doff
    pad_b = Hq * S - H - pad
    pad_r = Wq * S - W - pad
    assert pad_b >= 0 and pad_r >= 0
    WoC, WoO = Wo * C, Wo * out_c

    # ---- glue (one fused XLA copy): zero pad + polyphase (space-to-depth) split so every
    #      in-kernel depthwise tap is a static unit-stride slice; cast to compute dtype
    #      here so the large activation tensor hits HBM at half width when bf16.
    # TODO(synk): move pad + polyphase into the kernel via memory_space=pl.ANY + strided
    #             manual DMA to remove this HBM round trip entirely.
    # TODO(synk): when Wo*C < 128, lane-fold 2 images (or row pairs) into the 128-lane
    #             axis — requires matching SE-pool / pointwise / output-unpack changes.
    xp = jnp.pad(x_nhwc.astype(cd), ((0, 0), (pad, pad_b), (pad, pad_r), (0, 0)))
    xph = (xp.reshape(N, Hq, S, Wq, S, C)
             .transpose(0, 2, 4, 1, 3, 5)                # (N, S, S, Hq, Wq, C)
             .reshape(N, S * S, Hq, Wq * C))

    # ---- batch-chunk per grid step: VMEM- and TC-count-aware ----
    per_image = (2 * S * S * Hq * Wq * C * cd.itemsize           # double-buffered input
                 + 2 * Ho * WoO * jnp.dtype(out_dtype).itemsize  # double-buffered output
                 + (2 * Ho * WoC + Ho * WoO) * 4)                # live f32 activations
    weight_bytes = 2 * sum(int(w.size) * w.dtype.itemsize for w in prep["weights"])
    NB = _choose_batch_chunk(N, Ho, per_image, weight_bytes)
    vmem_limit = int(min(100 << 20, max(32 << 20, 2 * (NB * per_image + weight_bytes))))

    def full_spec(shape):
        r = len(shape)
        return pl.BlockSpec(shape, lambda b, _r=r: (0,) * _r)

    # TODO(synk): mark the grid-invariant weight specs pipeline_mode=pl.Buffered(1)
    #             (single-buffered) once verified on the deployed jax version.
    in_specs = [pl.BlockSpec((NB, S * S, Hq, Wq * C), lambda b: (b, 0, 0, 0))]
    in_specs += [full_spec(tuple(w.shape)) for w in prep["weights"]]

    out_flat = pl.pallas_call(
        functools.partial(_ds_kernel, K=K, S=S, Ho=Ho, Wo=Wo, C=C, NB=NB,
                          use_se=use_se, block_diag=block_diag),
        out_shape=jax.ShapeDtypeStruct((N * Ho, WoO), out_dtype),
        grid=(N // NB,),
        in_specs=in_specs,
        out_specs=pl.BlockSpec((NB * Ho, WoO), lambda b: (b, 0)),   # lane-dense slab
        compiler_params=pltpu.CompilerParams(
            dimension_semantics=("parallel",),
            vmem_limit_bytes=vmem_limit),
    )(xph, *prep["weights"])

    return out_flat.reshape(N, Ho, Wo, out_c)


def depthwise_separable_forward(x_nchw, prep, *, out_dtype=jnp.float32):
    """NCHW adapter (module spec interface). Keep the surrounding network NHWC and call
    depthwise_separable_forward_nhwc directly to drop these two HBM-glue transposes."""
    x_nhwc = jnp.transpose(x_nchw, (0, 2, 3, 1))
    out_nhwc = depthwise_separable_forward_nhwc(x_nhwc, prep, out_dtype=out_dtype)
    return jnp.transpose(out_nhwc, (0, 3, 1, 2))


def reference_forward(x_nchw, P, *, stride, kernel_size=3, use_se=True):
    """Pure-JAX reference mirroring the PyTorch forward (eval-mode BN)."""
    N, C, H, W = x_nchw.shape
    K, S = kernel_size, stride
    pad = (K - 1) // 2
    dw_w_oihw = jnp.transpose(P["dw_w"], (2, 0, 1))[:, None, :, :]      # (C,1,K,K)
    y = lax.conv_general_dilated(
        x_nchw, dw_w_oihw, (S, S), [(pad, pad), (pad, pad)],
        feature_group_count=C, dimension_numbers=("NCHW", "OIHW", "NCHW"))
    y = _leaky_relu(y * P["dw_scale"][None, :, None, None] + P["dw_bias"][None, :, None, None])
    if use_se:
        pooled = jnp.mean(y, axis=(2, 3))                               # (N, C)
        s = jnp.maximum(pooled @ P["se_w1"] + P["se_b1"], 0.0)
        gate = _hardsigmoid(s @ P["se_w2"] + P["se_b2"])                # (N, C)
        y = y * gate[:, :, None, None]
    z = jnp.einsum("nchw,co->nohw", y, P["pw_w"])
    z = _leaky_relu(z * P["pw_scale"][None, :, None, None] + P["pw_bias"][None, :, None, None])
    return z


def make_params(key, in_c, out_c, kernel_size=3, reduction=4):
    C, K = in_c, kernel_size
    Cr = C // reduction
    ks = jax.random.split(key, 16)
    eps = 1e-5

    dw_w = jax.random.normal(ks[0], (K, K, C), jnp.float32) * math.sqrt(2.0 / (K * K))
    dw_gamma = 1.0 + 0.1 * jax.random.normal(ks[1], (C,), jnp.float32)
    dw_beta = 0.1 * jax.random.normal(ks[2], (C,), jnp.float32)
    dw_mean = 0.1 * jax.random.normal(ks[3], (C,), jnp.float32)
    dw_var = 0.9 + 0.2 * jax.random.uniform(ks[4], (C,), jnp.float32)
    dw_scale = dw_gamma / jnp.sqrt(dw_var + eps)
    dw_bias = dw_beta - dw_mean * dw_scale

    se_w1 = jax.random.normal(ks[5], (C, Cr), jnp.float32) * math.sqrt(1.0 / C)
    se_b1 = 0.1 * jax.random.normal(ks[6], (Cr,), jnp.float32)
    se_w2 = jax.random.normal(ks[7], (Cr, C), jnp.float32) * math.sqrt(1.0 / max(Cr, 1))
    se_b2 = 0.1 * jax.random.normal(ks[8], (C,), jnp.float32)

    pw_w = jax.random.normal(ks[9], (C, out_c), jnp.float32) * math.sqrt(2.0 / C)
    pw_gamma = 1.0 + 0.1 * jax.random.normal(ks[10], (out_c,), jnp.float32)
    pw_beta = 0.1 * jax.random.normal(ks[11], (out_c,), jnp.float32)
    pw_mean = 0.1 * jax.random.normal(ks[12], (out_c,), jnp.float32)
    pw_var = 0.9 + 0.2 * jax.random.uniform(ks[13], (out_c,), jnp.float32)
    pw_scale = pw_gamma / jnp.sqrt(pw_var + eps)
    pw_bias = pw_beta - pw_mean * pw_scale

    return dict(dw_w=dw_w, dw_scale=dw_scale, dw_bias=dw_bias,
                se_w1=se_w1, se_b1=se_b1, se_w2=se_w2, se_b2=se_b2,
                pw_w=pw_w, pw_scale=pw_scale, pw_bias=pw_bias)


if __name__ == "__main__":
    # DepthwiseSeparable(in_c=8, out_c=16, stride=2, kernel_size=3, use_se=True, act='leaky_relu')
    N, C, H, W = 2, 8, 16, 16
    out_c, stride, ksize = 16, 2, 3

    key = jax.random.PRNGKey(0)
    kx, kp = jax.random.split(key)
    x = jax.random.normal(kx, (N, C, H, W), jnp.float32)
    params = make_params(kp, C, out_c, kernel_size=ksize, reduction=4)

    ref = reference_forward(x, params, stride=stride, kernel_size=ksize, use_se=True)
    assert ref.shape == (N, out_c, H // stride, W // stride)

    # (1) perf config: bf16 activation / pointwise-weight HBM I/O, f32 accumulation
    prep_bf16 = prepare_params(params, in_hw=(H, W), stride=stride, kernel_size=ksize,
                               use_se=True, compute_dtype=jnp.bfloat16)
    out_bf16 = jax.block_until_ready(
        jax.jit(lambda xx: depthwise_separable_forward(xx, prep_bf16))(x))
    assert out_bf16.shape == ref.shape
    assert jnp.allclose(out_bf16.astype(jnp.float32), ref, atol=1e-1, rtol=5e-2), \
        "bf16 kernel mismatch vs JAX reference"

    # (2) f32 config: tight numerical check
    prep_f32 = prepare_params(params, in_hw=(H, W), stride=stride, kernel_size=ksize,
                              use_se=True, compute_dtype=jnp.float32)
    out_f32 = jax.block_until_ready(
        jax.jit(lambda xx: depthwise_separable_forward(xx, prep_f32))(x))
    assert jnp.allclose(out_f32, ref, atol=1e-4, rtol=1e-4), "f32 kernel mismatch"

    # (3) forced non-block-diagonal pointwise path (the large-Wo fallback), tight check
    prep_nbd = prepare_params(params, in_hw=(H, W), stride=stride, kernel_size=ksize,
                              use_se=True, compute_dtype=jnp.float32, block_diag=False)
    out_nbd = jax.block_until_ready(
        jax.jit(lambda xx: depthwise_separable_forward(xx, prep_nbd))(x))
    assert jnp.allclose(out_nbd, ref, atol=1e-4, rtol=1e-4), "fallback pointwise path mismatch"

    print("KERNEL_OK")
</pallas_src>

<mosaic_0001>
module attributes {stable_mosaic.version = 11 : i64} {
  func.func @_ds_kernel(%arg0: i32, %arg1: memref<1x4x9x72xbf16, #tpu.memory_space<vmem>>, %arg2: memref<9x64xf32, #tpu.memory_space<vmem>>, %arg3: memref<1x64xf32, #tpu.memory_space<vmem>>, %arg4: memref<8x2xf32, #tpu.memory_space<vmem>>, %arg5: memref<1x2xf32, #tpu.memory_space<vmem>>, %arg6: memref<2x8xf32, #tpu.memory_space<vmem>>, %arg7: memref<1x8xf32, #tpu.memory_space<vmem>>, %arg8: memref<64x128xbf16, #tpu.memory_space<vmem>>, %arg9: memref<1x128xf32, #tpu.memory_space<vmem>>, %arg10: memref<8x128xf32, #tpu.memory_space<vmem>>) attributes {dimension_semantics = [#tpu.dimension_semantics<parallel>], iteration_bounds = array<i64: 2>, scalar_prefetch = 0 : i64, scratch_operands = 0 : i64, tpu.core_type = #tpu.core_type<tc>, window_params = [{transform_indices = @transform_0, window_bounds = array<i64: 1, 4, 9, 72>}, {pipeline_mode = #tpu.pipeline_mode<synchronous>, transform_indices = @transform_1, window_bounds = array<i64: 9, 64>}, {pipeline_mode = #tpu.pipeline_mode<synchronous>, transform_indices = @transform_2, window_bounds = array<i64: 1, 64>}, {pipeline_mode = #tpu.pipeline_mode<synchronous>, transform_indices = @transform_3, window_bounds = array<i64: 8, 2>}, {pipeline_mode = #tpu.pipeline_mode<synchronous>, transform_indices = @transform_4, window_bounds = array<i64: 1, 2>}, {pipeline_mode = #tpu.pipeline_mode<synchronous>, transform_indices = @transform_5, window_bounds = array<i64: 2, 8>}, {pipeline_mode = #tpu.pipeline_mode<synchronous>, transform_indices = @transform_6, window_bounds = array<i64: 1, 8>}, {pipeline_mode = #tpu.pipeline_mode<synchronous>, transform_indices = @transform_7, window_bounds = array<i64: 64, 128>}, {pipeline_mode = #tpu.pipeline_mode<synchronous>, transform_indices = @transform_8, window_bounds = array<i64: 1, 128>}, {transform_indices = @transform_9, window_bounds = array<i64: 8, 128>}]} {
    %c0 = arith.constant 0 : index
    %c0_0 = arith.constant 0 : index
    %0 = vector.load %arg2[%c0, %c0_0] : memref<9x64xf32, #tpu.memory_space<vmem>>, vector<9x64xf32>
    %cst = arith.constant 0.000000e+00 : f32
    %1 = vector.broadcast %cst : f32 to vector<1x8x64xf32>
    %c0_1 = arith.constant 0 : index
    %c0_2 = arith.constant 0 : index
    %c0_3 = arith.constant 0 : index
    %c0_4 = arith.constant 0 : index
    %2 = vector.load %arg1[%c0_1, %c0_2, %c0_3, %c0_4] : memref<1x4x9x72xbf16, #tpu.memory_space<vmem>>, vector<1x1x8x72xbf16>
    %3 = vector.shape_cast %2 : vector<1x1x8x72xbf16> to vector<1x8x72xbf16>
    %4 = vector.extract_strided_slice %3 {offsets = [0, 0, 0], sizes = [1, 8, 64], strides = [1, 1, 1]} : vector<1x8x72xbf16> to vector<1x8x64xbf16>
    %5 = vector.extract_strided_slice %0 {offsets = [0, 0], sizes = [1, 64], strides = [1, 1]} : vector<9x64xf32> to vector<1x64xf32>
    %6 = vector.shape_cast %5 : vector<1x64xf32> to vector<64xf32>
    %7 = arith.extf %4 : vector<1x8x64xbf16> to vector<1x8x64xf32>
    %8 = vector.shape_cast %6 : vector<64xf32> to vector<1x1x64xf32>
    %9 = vector.broadcast %8 : vector<1x1x64xf32> to vector<1x8x64xf32>
    %10 = arith.mulf %7, %9 : vector<1x8x64xf32>
    %11 = arith.addf %1, %10 : vector<1x8x64xf32>
    %12 = vector.extract_strided_slice %3 {offsets = [0, 0, 8], sizes = [1, 8, 64], strides = [1, 1, 1]} : vector<1x8x72xbf16> to vector<1x8x64xbf16>
    %13 = vector.extract_strided_slice %0 {offsets = [2, 0], sizes = [1, 64], strides = [1, 1]} : vector<9x64xf32> to vector<1x64xf32>
    %14 = vector.shape_cast %13 : vector<1x64xf32> to vector<64xf32>
    %15 = arith.extf %12 : vector<1x8x64xbf16> to vector<1x8x64xf32>
    %16 = vector.shape_cast %14 : vector<64xf32> to vector<1x1x64xf32>
    %17 = vector.broadcast %16 : vector<1x1x64xf32> to vector<1x8x64xf32>
    %18 = arith.mulf %15, %17 : vector<1x8x64xf32>
    %19 = arith.addf %11, %18 : vector<1x8x64xf32>
    %c0_5 = arith.constant 0 : index
    %c1 = arith.constant 1 : index
    %c0_6 = arith.constant 0 : index
    %c0_7 = arith.constant 0 : index
    %20 = vector.load %arg1[%c0_5, %c1, %c0_6, %c0_7] : memref<1x4x9x72xbf16, #tpu.memory_space<vmem>>, vector<1x1x8x64xbf16>
    %21 = vector.shape_cast %20 : vector<1x1x8x64xbf16> to vector<1x8x64xbf16>
    %22 = vector.extract_strided_slice %0 {offsets = [1, 0], sizes = [1, 64], strides = [1, 1]} : vector<9x64xf32> to vector<1x64xf32>
    %23 = vector.shape_cast %22 : vector<1x64xf32> to vector<64xf32>
    %24 = arith.extf %21 : vector<1x8x64xbf16> to vector<1x8x64xf32>
    %25 = vector.shape_cast %23 : vector<64xf32> to vector<1x1x64xf32>
    %26 = vector.broadcast %25 : vector<1x1x64xf32> to vector<1x8x64xf32>
    %27 = arith.mulf %24, %26 : vector<1x8x64xf32>
    %28 = arith.addf %19, %27 : vector<1x8x64xf32>
    %c0_8 = arith.constant 0 : index
    %c2 = arith.constant 2 : index
    %c0_9 = arith.constant 0 : index
    %c0_10 = arith.constant 0 : index
    %29 = vector.load %arg1[%c0_8, %c2, %c0_9, %c0_10] : memref<1x4x9x72xbf16, #tpu.memory_space<vmem>>, vector<1x1x8x72xbf16>
    %30 = vector.shape_cast %29 : vector<1x1x8x72xbf16> to vector<1x8x72xbf16>
    %31 = vector.extract_strided_slice %30 {offsets = [0, 0, 0], sizes = [1, 8, 64], strides = [1, 1, 1]} : vector<1x8x72xbf16> to vector<1x8x64xbf16>
    %32 = vector.extract_strided_slice %0 {offsets = [3, 0], sizes = [1, 64], strides = [1, 1]} : vector<9x64xf32> to vector<1x64xf32>
    %33 = vector.shape_cast %32 : vector<1x64xf32> to vector<64xf32>
    %34 = arith.extf %31 : vector<1x8x64xbf16> to vector<1x8x64xf32>
    %35 = vector.shape_cast %33 : vector<64xf32> to vector<1x1x64xf32>
    %36 = vector.broadcast %35 : vector<1x1x64xf32> to vector<1x8x64xf32>
    %37 = arith.mulf %34, %36 : vector<1x8x64xf32>
    %38 = arith.addf %28, %37 : vector<1x8x64xf32>
    %39 = vector.extract_strided_slice %30 {offsets = [0, 0, 8], sizes = [1, 8, 64], strides = [1, 1, 1]} : vector<1x8x72xbf16> to vector<1x8x64xbf16>
    %40 = vector.extract_strided_slice %0 {offsets = [5, 0], sizes = [1, 64], strides = [1, 1]} : vector<9x64xf32> to vector<1x64xf32>
    %41 = vector.shape_cast %40 : vector<1x64xf32> to vector<64xf32>
    %42 = arith.extf %39 : vector<1x8x64xbf16> to vector<1x8x64xf32>
    %43 = vector.shape_cast %41 : vector<64xf32> to vector<1x1x64xf32>
    %44 = vector.broadcast %43 : vector<1x1x64xf32> to vector<1x8x64xf32>
    %45 = arith.mulf %42, %44 : vector<1x8x64xf32>
    %46 = arith.addf %38, %45 : vector<1x8x64xf32>
    %c0_11 = arith.constant 0 : index
    %c3 = arith.constant 3 : index
    %c0_12 = arith.constant 0 : index
    %c0_13 = arith.constant 0 : index
    %47 = vector.load %arg1[%c0_11, %c3, %c0_12, %c0_13] : memref<1x4x9x72xbf16, #tpu.memory_space<vmem>>, vector<1x1x8x64xbf16>
    %48 = vector.shape_cast %47 : vector<1x1x8x64xbf16> to vector<1x8x64xbf16>
    %49 = vector.extract_strided_slice %0 {offsets = [4, 0], sizes = [1, 64], strides = [1, 1]} : vector<9x64xf32> to vector<1x64xf32>
    %50 = vector.shape_cast %49 : vector<1x64xf32> to vector<64xf32>
    %51 = arith.extf %48 : vector<1x8x64xbf16> to vector<1x8x64xf32>
    %52 = vector.shape_cast %50 : vector<64xf32> to vector<1x1x64xf32>
    %53 = vector.broadcast %52 : vector<1x1x64xf32> to vector<1x8x64xf32>
    %54 = arith.mulf %51, %53 : vector<1x8x64xf32>
    %55 = arith.addf %46, %54 : vector<1x8x64xf32>
    %c0_14 = arith.constant 0 : index
    %c0_15 = arith.constant 0 : index
    %c1_16 = arith.constant 1 : index
    %c0_17 = arith.constant 0 : index
    %56 = vector.load %arg1[%c0_14, %c0_15, %c1_16, %c0_17] : memref<1x4x9x72xbf16, #tpu.memory_space<vmem>>, vector<1x1x8x72xbf16>
    %57 = vector.shape_cast %56 : vector<1x1x8x72xbf16> to vector<1x8x72xbf16>
    %58 = vector.extract_strided_slice %57 {offsets = [0, 0, 0], sizes = [1, 8, 64], strides = [1, 1, 1]} : vector<1x8x72xbf16> to vector<1x8x64xbf16>
    %59 = vector.extract_strided_slice %0 {offsets = [6, 0], sizes = [1, 64], strides = [1, 1]} : vector<9x64xf32> to vector<1x64xf32>
    %60 = vector.shape_cast %59 : vector<1x64xf32> to vector<64xf32>
    %61 = arith.extf %58 : vector<1x8x64xbf16> to vector<1x8x64xf32>
    %62 = vector.shape_cast %60 : vector<64xf32> to vector<1x1x64xf32>
    %63 = vector.broadcast %62 : vector<1x1x64xf32> to vector<1x8x64xf32>
    %64 = arith.mulf %61, %63 : vector<1x8x64xf32>
    %65 = arith.addf %55, %64 : vector<1x8x64xf32>
    %66 = vector.extract_strided_slice %57 {offsets = [0, 0, 8], sizes = [1, 8, 64], strides = [1, 1, 1]} : vector<1x8x72xbf16> to vector<1x8x64xbf16>
    %67 = vector.extract_strided_slice %0 {offsets = [8, 0], sizes = [1, 64], strides = [1, 1]} : vector<9x64xf32> to vector<1x64xf32>
    %68 = vector.shape_cast %67 : vector<1x64xf32> to vector<64xf32>
    %69 = arith.extf %66 : vector<1x8x64xbf16> to vector<1x8x64xf32>
    %70 = vector.shape_cast %68 : vector<64xf32> to vector<1x1x64xf32>
    %71 = vector.broadcast %70 : vector<1x1x64xf32> to vector<1x8x64xf32>
    %72 = arith.mulf %69, %71 : vector<1x8x64xf32>
    %73 = arith.addf %65, %72 : vector<1x8x64xf32>
    %c0_18 = arith.constant 0 : index
    %c1_19 = arith.constant 1 : index
    %c1_20 = arith.constant 1 : index
    %c0_21 = arith.constant 0 : index
    %74 = vector.load %arg1[%c0_18, %c1_19, %c1_20, %c0_21] : memref<1x4x9x72xbf16, #tpu.memory_space<vmem>>, vector<1x1x8x64xbf16>
    %75 = vector.shape_cast %74 : vector<1x1x8x64xbf16> to vector<1x8x64xbf16>
    %76 = vector.extract_strided_slice %0 {offsets = [7, 0], sizes = [1, 64], strides = [1, 1]} : vector<9x64xf32> to vector<1x64xf32>
    %77 = vector.shape_cast %76 : vector<1x64xf32> to vector<64xf32>
    %78 = arith.extf %75 : vector<1x8x64xbf16> to vector<1x8x64xf32>
    %79 = vector.shape_cast %77 : vector<64xf32> to vector<1x1x64xf32>
    %80 = vector.broadcast %79 : vector<1x1x64xf32> to vector<1x8x64xf32>
    %81 = arith.mulf %78, %80 : vector<1x8x64xf32>
    %82 = arith.addf %73, %81 : vector<1x8x64xf32>
    %c0_22 = arith.constant 0 : index
    %c0_23 = arith.constant 0 : index
    %83 = vector.load %arg3[%c0_22, %c0_23] : memref<1x64xf32, #tpu.memory_space<vmem>>, vector<1x64xf32>
    %84 = vector.shape_cast %83 : vector<1x64xf32> to vector<1x1x64xf32>
    %85 = vector.broadcast %84 : vector<1x1x64xf32> to vector<1x8x64xf32>
    %86 = arith.addf %82, %85 : vector<1x8x64xf32>
    %cst_24 = arith.constant 0.000000e+00 : f32
    %87 = vector.broadcast %cst_24 : f32 to vector<1x8x64xf32>
    %88 = arith.cmpf ogt, %86, %87 : vector<1x8x64xf32>
    %cst_25 = arith.constant 0.00999999977 : f32
    %89 = vector.broadcast %cst_25 : f32 to vector<1x8x64xf32>
    %90 = arith.mulf %89, %86 : vector<1x8x64xf32>
    %91 = arith.select %88, %86, %90 : vector<1x8x64xi1>, vector<1x8x64xf32>
    %cst_26 = arith.constant dense<0.000000e+00> : vector<1x64xf32>
    %92 = vector.multi_reduction <add>, %91, %cst_26 [1] : vector<1x8x64xf32> to vector<1x64xf32>
    %93 = vector.extract_strided_slice %92 {offsets = [0, 0], sizes = [1, 32], strides = [1, 1]} : vector<1x64xf32> to vector<1x32xf32>
    %94 = vector.extract_strided_slice %92 {offsets = [0, 32], sizes = [1, 32], strides = [1, 1]} : vector<1x64xf32> to vector<1x32xf32>
    %95 = arith.addf %93, %94 : vector<1x32xf32>
    %96 = vector.extract_strided_slice %95 {offsets = [0, 0], sizes = [1, 16], strides = [1, 1]} : vector<1x32xf32> to vector<1x16xf32>
    %97 = vector.extract_strided_slice %95 {offsets = [0, 16], sizes = [1, 16], strides = [1, 1]} : vector<1x32xf32> to vector<1x16xf32>
    %98 = arith.addf %96, %97 : vector<1x16xf32>
    %99 = vector.extract_strided_slice %98 {offsets = [0, 0], sizes = [1, 8], strides = [1, 1]} : vector<1x16xf32> to vector<1x8xf32>
    %100 = vector.extract_strided_slice %98 {offsets = [0, 8], sizes = [1, 8], strides = [1, 1]} : vector<1x16xf32> to vector<1x8xf32>
    %101 = arith.addf %99, %100 : vector<1x8xf32>
    %cst_27 = arith.constant 1.562500e-02 : f32
    %102 = vector.broadcast %cst_27 : f32 to vector<1x8xf32>
    %103 = arith.mulf %101, %102 : vector<1x8xf32>
    %c0_28 = arith.constant 0 : index
    %c0_29 = arith.constant 0 : index
    %104 = vector.load %arg4[%c0_28, %c0_29] : memref<8x2xf32, #tpu.memory_space<vmem>>, vector<8x2xf32>
    %cst_30 = arith.constant dense<0.000000e+00> : vector<1x2xf32>
    %105 = tpu.matmul %103, %104, %cst_30 {dimension_numbers = #tpu.dot_dimension_numbers<[1], [0], [0], [1], [0, 0, 1, 1], [], []>} : vector<1x8xf32>, vector<8x2xf32>, vector<1x2xf32> -> vector<1x2xf32>
    %c0_31 = arith.constant 0 : index
    %c0_32 = arith.constant 0 : index
    %106 = vector.load %arg5[%c0_31, %c0_32] : memref<1x2xf32, #tpu.memory_space<vmem>>, vector<1x2xf32>
    %107 = arith.addf %105, %106 : vector<1x2xf32>
    %cst_33 = arith.constant 0.000000e+00 : f32
    %108 = vector.broadcast %cst_33 : f32 to vector<1x2xf32>
    %109 = arith.maximumf %107, %108 : vector<1x2xf32>
    %c0_34 = arith.constant 0 : index
    %c0_35 = arith.constant 0 : index
    %110 = vector.load %arg6[%c0_34, %c0_35] : memref<2x8xf32, #tpu.memory_space<vmem>>, vector<2x8xf32>
    %cst_36 = arith.constant dense<0.000000e+00> : vector<1x8xf32>
    %111 = tpu.matmul %109, %110, %cst_36 {dimension_numbers = #tpu.dot_dimension_numbers<[1], [0], [0], [1], [0, 0, 1, 1], [], []>} : vector<1x2xf32>, vector<2x8xf32>, vector<1x8xf32> -> vector<1x8xf32>
    %c0_37 = arith.constant 0 : index
    %c0_38 = arith.constant 0 : index
    %112 = vector.load %arg7[%c0_37, %c0_38] : memref<1x8xf32, #tpu.memory_space<vmem>>, vector<1x8xf32>
    %113 = arith.addf %111, %112 : vector<1x8xf32>
    %cst_39 = arith.constant 3.000000e+00 : f32
    %114 = vector.broadcast %cst_39 : f32 to vector<1x8xf32>
    %115 = arith.addf %113, %114 : vector<1x8xf32>
    %cst_40 = arith.constant 6.000000e+00 : f32
    %116 = vector.broadcast %cst_40 : f32 to vector<1x8xf32>
    %117 = arith.divf %115, %116 : vector<1x8xf32>
    %cst_41 = arith.constant 0.000000e+00 : f32
    %cst_42 = arith.constant 1.000000e+00 : f32
    %118 = vector.broadcast %cst_41 : f32 to vector<1x8xf32>
    %119 = arith.maximumf %118, %117 : vector<1x8xf32>
    %120 = vector.broadcast %cst_42 : f32 to vector<1x8xf32>
    %121 = arith.minimumf %120, %119 : vector<1x8xf32>
    %122 = tpu.concatenate %121, %121, %121, %121, %121, %121, %121, %121 in 1 : vector<1x8xf32>, vector<1x8xf32>, vector<1x8xf32>, vector<1x8xf32>, vector<1x8xf32>, vector<1x8xf32>, vector<1x8xf32>, vector<1x8xf32> -> vector<1x64xf32>
    %123 = vector.shape_cast %122 : vector<1x64xf32> to vector<1x1x64xf32>
    %124 = vector.broadcast %123 : vector<1x1x64xf32> to vector<1x8x64xf32>
    %125 = arith.mulf %91, %124 : vector<1x8x64xf32>
    %126 = vector.shape_cast %125 : vector<1x8x64xf32> to vector<8x64xf32>
    %c0_43 = arith.constant 0 : index
    %c0_44 = arith.constant 0 : index
    %127 = vector.load %arg8[%c0_43, %c0_44] : memref<64x128xbf16, #tpu.memory_space<vmem>>, vector<64x128xbf16>
    %128 = arith.truncf %126 : vector<8x64xf32> to vector<8x64xbf16>
    %cst_45 = arith.constant dense<0.000000e+00> : vector<8x128xf32>
    %129 = tpu.matmul %128, %127, %cst_45 {dimension_numbers = #tpu.dot_dimension_numbers<[1], [0], [0], [1], [0, 0, 1, 1], [], []>} : vector<8x64xbf16>, vector<64x128xbf16>, vector<8x128xf32> -> vector<8x128xf32>
    %c0_46 = arith.constant 0 : index
    %c0_47 = arith.constant 0 : index
    %130 = vector.load %arg9[%c0_46, %c0_47] : memref<1x128xf32, #tpu.memory_space<vmem>>, vector<1x128xf32>
    %131 = vector.broadcast %130 : vector<1x128xf32> to vector<8x128xf32>
    %132 = arith.addf %129, %131 : vector<8x128xf32>
    %cst_48 = arith.constant 0.000000e+00 : f32
    %133 = vector.broadcast %cst_48 : f32 to vector<8x128xf32>
    %134 = arith.cmpf ogt, %132, %133 : vector<8x128xf32>
    %cst_49 = arith.constant 0.00999999977 : f32
    %135 = vector.broadcast %cst_49 : f32 to vector<8x128xf32>
    %136 = arith.mulf %135, %132 : vector<8x128xf32>
    %137 = arith.select %134, %132, %136 : vector<8x128xi1>, vector<8x128xf32>
    %c0_50 = arith.constant 0 : index
    %c0_51 = arith.constant 0 : index
    %138 = vector.load %arg10[%c0_50, %c0_51] : memref<8x128xf32, #tpu.memory_space<vmem>>, vector<8x128xf32>
    tpu.vector_store %arg10[%c0_50, %c0_51], %137 {strides = array<i32>} : memref<8x128xf32, #tpu.memory_space<vmem>>, vector<8x128xf32>,
    return
  }
  func.func @transform_0(%arg0: i32) -> (i32, i32, i32, i32) {
    %c0_i32 = arith.constant 0 : i32
    %c0_i32_0 = arith.constant 0 : i32
    %c0_i32_1 = arith.constant 0 : i32
    %c0_i32_2 = arith.constant 0 : i32
    return %arg0, %c0_i32, %c0_i32_0, %c0_i32_1 : i32, i32, i32, i32
  }
  func.func @transform_1(%arg0: i32) -> (i32, i32) {
    %c0_i32 = arith.constant 0 : i32
    %c0_i32_0 = arith.constant 0 : i32
    %c0_i32_1 = arith.constant 0 : i32
    return %c0_i32, %c0_i32_0 : i32, i32
  }
  func.func @transform_2(%arg0: i32) -> (i32, i32) {
    %c0_i32 = arith.constant 0 : i32
    %c0_i32_0 = arith.constant 0 : i32
    %c0_i32_1 = arith.constant 0 : i32
    return %c0_i32, %c0_i32_0 : i32, i32
  }
  func.func @transform_3(%arg0: i32) -> (i32, i32) {
    %c0_i32 = arith.constant 0 : i32
    %c0_i32_0 = arith.constant 0 : i32
    %c0_i32_1 = arith.constant 0 : i32
    return %c0_i32, %c0_i32_0 : i32, i32
  }
  func.func @transform_4(%arg0: i32) -> (i32, i32) {
    %c0_i32 = arith.constant 0 : i32
    %c0_i32_0 = arith.constant 0 : i32
    %c0_i32_1 = arith.constant 0 : i32
    return %c0_i32, %c0_i32_0 : i32, i32
  }
  func.func @transform_5(%arg0: i32) -> (i32, i32) {
    %c0_i32 = arith.constant 0 : i32
    %c0_i32_0 = arith.constant 0 : i32
    %c0_i32_1 = arith.constant 0 : i32
    return %c0_i32, %c0_i32_0 : i32, i32
  }
  func.func @transform_6(%arg0: i32) -> (i32, i32) {
    %c0_i32 = arith.constant 0 : i32
    %c0_i32_0 = arith.constant 0 : i32
    %c0_i32_1 = arith.constant 0 : i32
    return %c0_i32, %c0_i32_0 : i32, i32
  }
  func.func @transform_7(%arg0: i32) -> (i32, i32) {
    %c0_i32 = arith.constant 0 : i32
    %c0_i32_0 = arith.constant 0 : i32
    %c0_i32_1 = arith.constant 0 : i32
    return %c0_i32, %c0_i32_0 : i32, i32
  }
  func.func @transform_8(%arg0: i32) -> (i32, i32) {
    %c0_i32 = arith.constant 0 : i32
    %c0_i32_0 = arith.constant 0 : i32
    %c0_i32_1 = arith.constant 0 : i32
    return %c0_i32, %c0_i32_0 : i32, i32
  }
  func.func @transform_9(%arg0: i32) -> (i32, i32) {
    %c0_i32 = arith.constant 0 : i32
    %c0_i32_0 = arith.constant 0 : i32
    return %arg0, %c0_i32 : i32, i32
  }
}

</mosaic_0001>

<llo_original>
// kernel: _lambda_.1
$region0: #{_lambda_.1}
  #allocation0 [shape = 'u32[]', space=smem, size = 0x4, offset = 0x4, fixed_abs, tag = 'smem constant byte address 0x4 - core index']
  #allocation1 [shape = 'u32[144,128]{1,0:T(1,128)}', space=vmem, size = 0x12000, scoped, tag = 'internal scratch']
  %s0 = inlined_call_operand.vmem [shape: bf16[2,4,9,72], index: 0, kind: input, shape index: {}]
  %s1 = inlined_call_operand.vmem [shape: f32[9,64], index: 1, kind: input, shape index: {}]
  %s2 = inlined_call_operand.vmem [shape: f32[1,64], index: 2, kind: input, shape index: {}]
  %s3 = inlined_call_operand.vmem [shape: f32[8,2], index: 3, kind: input, shape index: {}]
  %s4 = inlined_call_operand.vmem [shape: f32[1,2], index: 4, kind: input, shape index: {}]
  %s5 = inlined_call_operand.vmem [shape: f32[2,8], index: 5, kind: input, shape index: {}]
  %s6 = inlined_call_operand.vmem [shape: f32[1,8], index: 6, kind: input, shape index: {}]
  %s7 = inlined_call_operand.vmem [shape: bf16[64,128], index: 7, kind: input, shape index: {}]
  %s8 = inlined_call_operand.vmem [shape: f32[1,128], index: 8, kind: input, shape index: {}]
  %s9 = inlined_call_operand.vmem [shape: f32[16,128], index: 9, kind: output, shape index: {}]
  %s10 = sld [smem:[#allocation0]]
  $region69: #{_lambda_.1} parent=0
    _
  %s12 = ssub.s32 1, %s10
  %s13 = scalar_select 0, %s12, %s10
  loop: start=0, step=1, limit=4
  $region2: #{_lambda_.1} parent=0 // loop_pre_header
    _
  $region3: #{_lambda_.1} parent=0 // loop_header
    %s15 = sphi 0, %s19
    %p16 = scmp.ge.s32.totalorder %s15, 4
    %s25 = sphi 0, %s27
    %s28 = sphi 0, %s25
    %s29 = sphi 0, %s28
    %s45 = sphi 0, %s29
    %s49 = sphi 0, %s49
    %s51 = sphi 0, %s49
    %s52 = sphi 0, %s51
    %s66 = sphi 0, %s52
    %s70 = sphi 0, %s70
    %s72 = sphi 0, %s70
    %s73 = sphi 0, %s72
    %s87 = sphi 0, %s73
    %s91 = sphi 0, %s91
    %s93 = sphi 0, %s91
    %s94 = sphi 0, %s93
    %s108 = sphi 0, %s94
    %s112 = sphi 0, %s112
    %s114 = sphi 0, %s112
    %s115 = sphi 0, %s114
    %s129 = sphi 0, %s115
    %s133 = sphi 0, %s133
    %s135 = sphi 0, %s133
    %s136 = sphi 0, %s135
    %s150 = sphi 0, %s136
    %s154 = sphi 0, %s154
    %s156 = sphi 0, %s154
    %s157 = sphi 0, %s156
    %s171 = sphi 0, %s157
    %s175 = sphi 0, %s175
    %s177 = sphi 0, %s175
    %s178 = sphi 0, %s177
    %s192 = sphi 0, %s178
    %s196 = sphi 0, %s196
    %s198 = sphi 0, %s196
    %s199 = sphi 0, %s198
    %s213 = sphi 0, %s199
    %s219 = sphi 0, %s221
    %s222 = sphi 0, %s219
    %s223 = sphi 0, %s222
    %s239 = sphi 0, %s223
  $region4: #{_lambda_.1} parent=0 // loop_header_branch
    %18 = sbr.rel (%p16) target = $region8
  $region5: #{_lambda_.1} parent=0 // loop_body
    %s20 = ssub.s32 %s15, 1
    %s21 = ssub.s32 %s15, 2
    %s22 = sadd.s32 %s15, 1
    %s23 = ssub.s32 %s15, %s22
    %p24 = scmp.eq.s32.totalorder %s23, 0
    %s26 = sadd.s32 %s25, 1
    %s27 = scalar_select %p24, %s25, %s26
    %p30 = pneg %p24
    %p31 = scmp.eq.s32.totalorder %s15, 1
    %p32 = por %p30, %p31
    %p33 = scmp.ne.s32.totalorder %s25, %s28
    %p34 = scmp.eq.s32.totalorder %s15, 0
    %p35 = por %p33, %p34
    %p36 = scmp.ne.s32.totalorder %s25, %s28
    %p37 = scmp.eq.s32.totalorder %s20, 1
    %p38 = por %p36, %p37
    %p39 = scmp.ne.s32.totalorder %s28, %s29
    %p40 = scmp.eq.s32.totalorder %s20, 0
    %p41 = por %p39, %p40
    %p42 = scmp.ne.s32.totalorder %s28, %s29
    %p43 = scmp.eq.s32.totalorder %s21, 1
    %p44 = por %p42, %p43
    %p46 = scmp.ne.s32.totalorder %s29, %s45
    %p47 = scmp.eq.s32.totalorder %s21, 0
    %p48 = por %p46, %p47
    %s50 = sadd.s32 %s49, 1
    %p53 = scmp.eq.s32.totalorder %s15, 1
    %p54 = scmp.ne.s32.totalorder %s49, %s51
    %p55 = scmp.eq.s32.totalorder %s15, 0
    %p56 = por %p54, %p55
    %p57 = scmp.ne.s32.totalorder %s49, %s51
    %p58 = scmp.eq.s32.totalorder %s20, 1
    %p59 = por %p57, %p58
    %p60 = scmp.ne.s32.totalorder %s51, %s52
    %p61 = scmp.eq.s32.totalorder %s20, 0
    %p62 = por %p60, %p61
    %p63 = scmp.ne.s32.totalorder %s51, %s52
    %p64 = scmp.eq.s32.totalorder %s21, 1
    %p65 = por %p63, %p64
    %p67 = scmp.ne.s32.totalorder %s52, %s66
    %p68 = scmp.eq.s32.totalorder %s21, 0
    %p69 = por %p67, %p68
    %s71 = sadd.s32 %s70, 1
    %p74 = scmp.eq.s32.totalorder %s15, 1
    %p75 = scmp.ne.s32.totalorder %s70, %s72
    %p76 = scmp.eq.s32.totalorder %s15, 0
    %p77 = por %p75, %p76
    %p78 = scmp.ne.s32.totalorder %s70, %s72
    %p79 = scmp.eq.s32.totalorder %s20, 1
    %p80 = por %p78, %p79
    %p81 = scmp.ne.s32.totalorder %s72, %s73
    %p82 = scmp.eq.s32.totalorder %s20, 0
    %p83 = por %p81, %p82
    %p84 = scmp.ne.s32.totalorder %s72, %s73
    %p85 = scmp.eq.s32.totalorder %s21, 1
    %p86 = por %p84, %p85
    %p88 = scmp.ne.s32.totalorder %s73, %s87
    %p89 = scmp.eq.s32.totalorder %s21, 0
    %p90 = por %p88, %p89
    %s92 = sadd.s32 %s91, 1
    %p95 = scmp.eq.s32.totalorder %s15, 1
    %p96 = scmp.ne.s32.totalorder %s91, %s93
    %p97 = scmp.eq.s32.totalorder %s15, 0
    %p98 = por %p96, %p97
    %p99 = scmp.ne.s32.totalorder %s91, %s93
    %p100 = scmp.eq.s32.totalorder %s20, 1
    %p101 = por %p99, %p100
    %p102 = scmp.ne.s32.totalorder %s93, %s94
    %p103 = scmp.eq.s32.totalorder %s20, 0
    %p104 = por %p102, %p103
    %p105 = scmp.ne.s32.totalorder %s93, %s94
    %p106 = scmp.eq.s32.totalorder %s21, 1
    %p107 = por %p105, %p106
    %p109 = scmp.ne.s32.totalorder %s94, %s108
    %p110 = scmp.eq.s32.totalorder %s21, 0
    %p111 = por %p109, %p110
    %s113 = sadd.s32 %s112, 1
    %p116 = scmp.eq.s32.totalorder %s15, 1
    %p117 = scmp.ne.s32.totalorder %s112, %s114
    %p118 = scmp.eq.s32.totalorder %s15, 0
    %p119 = por %p117, %p118
    %p120 = scmp.ne.s32.totalorder %s112, %s114
    %p121 = scmp.eq.s32.totalorder %s20, 1
    %p122 = por %p120, %p121
    %p123 = scmp.ne.s32.totalorder %s114, %s115
    %p124 = scmp.eq.s32.totalorder %s20, 0
    %p125 = por %p123, %p124
    %p126 = scmp.ne.s32.totalorder %s114, %s115
    %p127 = scmp.eq.s32.totalorder %s21, 1
    %p128 = por %p126, %p127
    %p130 = scmp.ne.s32.totalorder %s115, %s129
    %p131 = scmp.eq.s32.totalorder %s21, 0
    %p132 = por %p130, %p131
    %s134 = sadd.s32 %s133, 1
    %p137 = scmp.eq.s32.totalorder %s15, 1
    %p138 = scmp.ne.s32.totalorder %s133, %s135
    %p139 = scmp.eq.s32.totalorder %s15, 0
    %p140 = por %p138, %p139
    %p141 = scmp.ne.s32.totalorder %s133, %s135
    %p142 = scmp.eq.s32.totalorder %s20, 1
    %p143 = por %p141, %p142
    %p144 = scmp.ne.s32.totalorder %s135, %s136
    %p145 = scmp.eq.s32.totalorder %s20, 0
    %p146 = por %p144, %p145
    %p147 = scmp.ne.s32.totalorder %s135, %s136
    %p148 = scmp.eq.s32.totalorder %s21, 1
    %p149 = por %p147, %p148
    %p151 = scmp.ne.s32.totalorder %s136, %s150
    %p152 = scmp.eq.s32.totalorder %s21, 0
    %p153 = por %p151, %p152
    %s155 = sadd.s32 %s154, 1
    %p158 = scmp.eq.s32.totalorder %s15, 1
    %p159 = scmp.ne.s32.totalorder %s154, %s156
    %p160 = scmp.eq.s32.totalorder %s15, 0
    %p161 = por %p159, %p160
    %p162 = scmp.ne.s32.totalorder %s154, %s156
    %p163 = scmp.eq.s32.totalorder %s20, 1
    %p164 = por %p162, %p163
    %p165 = scmp.ne.s32.totalorder %s156, %s157
    %p166 = scmp.eq.s32.totalorder %s20, 0
    %p167 = por %p165, %p166
    %p168 = scmp.ne.s32.totalorder %s156, %s157
    %p169 = scmp.eq.s32.totalorder %s21, 1
    %p170 = por %p168, %p169
    %p172 = scmp.ne.s32.totalorder %s157, %s171
    %p173 = scmp.eq.s32.totalorder %s21, 0
    %p174 = por %p172, %p173
    %s176 = sadd.s32 %s175, 1
    %p179 = scmp.eq.s32.totalorder %s15, 1
    %p180 = scmp.ne.s32.totalorder %s175, %s177
    %p181 = scmp.eq.s32.totalorder %s15, 0
    %p182 = por %p180, %p181
    %p183 = scmp.ne.s32.totalorder %s175, %s177
    %p184 = scmp.eq.s32.totalorder %s20, 1
    %p185 = por %p183, %p184
    %p186 = scmp.ne.s32.totalorder %s177, %s178
    %p187 = scmp.eq.s32.totalorder %s20, 0
    %p188 = por %p186, %p187
    %p189 = scmp.ne.s32.totalorder %s177, %s178
    %p190 = scmp.eq.s32.totalorder %s21, 1
    %p191 = por %p189, %p190
    %p193 = scmp.ne.s32.totalorder %s178, %s192
    %p194 = scmp.eq.s32.totalorder %s21, 0
    %p195 = por %p193, %p194
    %s197 = sadd.s32 %s196, 1
    %p200 = scmp.eq.s32.totalorder %s15, 1
    %p201 = scmp.ne.s32.totalorder %s196, %s198
    %p202 = scmp.eq.s32.totalorder %s15, 0
    %p203 = por %p201, %p202
    %p204 = scmp.ne.s32.totalorder %s196, %s198
    %p205 = scmp.eq.s32.totalorder %s20, 1
    %p206 = por %p204, %p205
    %p207 = scmp.ne.s32.totalorder %s198, %s199
    %p208 = scmp.eq.s32.totalorder %s20, 0
    %p209 = por %p207, %p208
    %p210 = scmp.ne.s32.totalorder %s198, %s199
    %p211 = scmp.eq.s32.totalorder %s21, 1
    %p212 = por %p210, %p211
    %p214 = scmp.ne.s32.totalorder %s199, %s213
    %p215 = scmp.eq.s32.totalorder %s21, 0
    %p216 = por %p214, %p215
    %s217 = ssub.s32 %s15, %s22
    %p218 = scmp.eq.s32.totalorder %s217, 0
    %s220 = sadd.s32 %s219, 1
    %s221 = scalar_select %p218, %s219, %s220
    %p224 = pneg %p218
    %p225 = scmp.eq.s32.totalorder %s15, 1
    %p226 = por %p224, %p225
    %p227 = scmp.ne.s32.totalorder %s219, %s222
    %p228 = scmp.eq.s32.totalorder %s15, 0
    %p229 = por %p227, %p228
    %p230 = scmp.ne.s32.totalorder %s219, %s222
    %p231 = scmp.eq.s32.totalorder %s20, 1
    %p232 = por %p230, %p231
    %p233 = scmp.ne.s32.totalorder %s222, %s223
    %p234 = scmp.eq.s32.totalorder %s20, 0
    %p235 = por %p233, %p234
    %p236 = scmp.ne.s32.totalorder %s222, %s223
    %p237 = scmp.eq.s32.totalorder %s21, 1
    %p238 = por %p236, %p237
    %p240 = scmp.ne.s32.totalorder %s223, %s239
    %p241 = scmp.eq.s32.totalorder %s21, 0
    %p242 = por %p240, %p241
    %p243 = scmp.le.s32.totalorder 1, %s15
    %p244 = scmp.lt.s32.totalorder %s15, 3
    %p245 = pnand %p243, %p244
    %p246 = pneg %p245
    // Predicated region
    $region9: #{_lambda_.1} parent=5 // pred_check
      _
    $region10: #{_lambda_.1} parent=5 // pred_check_branch
      %248 = sbr.rel (%p245) target = $region12
    $region11: #{_lambda_.1} parent=5 // pred_region
      %s249 = ssub.s32 %s15, 1
      // Predicated region
      $region13: #{_lambda_.1} parent=11 // pred_check
        %p250 = pneg %p62
      $region14: #{_lambda_.1} parent=11 // pred_check_branch
        %252 = sbr.rel (%p250) target = $region16
      $region15: #{_lambda_.1} parent=11 // pred_region
        _
      $region16: #{_lambda_.1} parent=11 // pred_fallthru
        _
      // Predicated region
      $region17: #{_lambda_.1} parent=11 // pred_check
        %p253 = pneg %p83
      $region18: #{_lambda_.1} parent=11 // pred_check_branch
        %255 = sbr.rel (%p253) target = $region20
      $region19: #{_lambda_.1} parent=11 // pred_region
        _
      $region20: #{_lambda_.1} parent=11 // pred_fallthru
        _
      // Predicated region
      $region21: #{_lambda_.1} parent=11 // pred_check
        %p256 = pneg %p104
      $region22: #{_lambda_.1} parent=11 // pred_check_branch
        %258 = sbr.rel (%p256) target = $region24
      $region23: #{_lambda_.1} parent=11 // pred_region
        _
      $region24: #{_lambda_.1} parent=11 // pred_fallthru
        _
      // Predicated region
      $region25: #{_lambda_.1} parent=11 // pred_check
        %p259 = pneg %p125
      $region26: #{_lambda_.1} parent=11 // pred_check_branch
        %261 = sbr.rel (%p259) target = $region28
      $region27: #{_lambda_.1} parent=11 // pred_region
        _
      $region28: #{_lambda_.1} parent=11 // pred_fallthru
        _
      // Predicated region
      $region29: #{_lambda_.1} parent=11 // pred_check
        %p262 = pneg %p146
      $region30: #{_lambda_.1} parent=11 // pred_check_branch
        %264 = sbr.rel (%p262) target = $region32
      $region31: #{_lambda_.1} parent=11 // pred_region
        _
      $region32: #{_lambda_.1} parent=11 // pred_fallthru
        _
      // Predicated region
      $region33: #{_lambda_.1} parent=11 // pred_check
        %p265 = pneg %p167
      $region34: #{_lambda_.1} parent=11 // pred_check_branch
        %267 = sbr.rel (%p265) target = $region36
      $region35: #{_lambda_.1} parent=11 // pred_region
        _
      $region36: #{_lambda_.1} parent=11 // pred_fallthru
        _
      // Predicated region
      $region37: #{_lambda_.1} parent=11 // pred_check
        %p268 = pneg %p188
      $region38: #{_lambda_.1} parent=11 // pred_check_branch
        %270 = sbr.rel (%p268) target = $region40
      $region39: #{_lambda_.1} parent=11 // pred_region
        _
      $region40: #{_lambda_.1} parent=11 // pred_fallthru
        _
      // Predicated region
      $region41: #{_lambda_.1} parent=11 // pred_check
        %p271 = pneg %p209
      $region42: #{_lambda_.1} parent=11 // pred_check_branch
        %273 = sbr.rel (%p271) target = $region44
      $region43: #{_lambda_.1} parent=11 // pred_region
        _
      $region44: #{_lambda_.1} parent=11 // pred_fallthru
        _
    $region12: #{_lambda_.1} parent=5 // pred_fallthru
      _
    %p274 = scmp.lt.s32.totalorder %s15, 2
    // Predicated region
    $region45: #{_lambda_.1} parent=5 // pred_check
      %p275 = pneg %p274
    $region46: #{_lambda_.1} parent=5 // pred_check_branch
      %277 = sbr.rel (%p275) target = $region48
    $region47: #{_lambda_.1} parent=5 // pred_region
      // Predicated region
      $region49: #{_lambda_.1} parent=47 // pred_check
        %p278 = pneg %p35
      $region50: #{_lambda_.1} parent=47 // pred_check_branch
        %280 = sbr.rel (%p278) target = $region52
      $region51: #{_lambda_.1} parent=47 // pred_region
        %p281 = scmp.lt.s32.totalorder %s15, 1
        %s282 = scalar_select %p281, %s15, 1
        %s283 = smul.addr %s282, 8
        %s284 = smul.addr %s283, 4
        %s285 = scalar_lea.vmem %s0, %s284
      $region52: #{_lambda_.1} parent=47 // pred_fallthru
        _
    $region48: #{_lambda_.1} parent=5 // pred_fallthru
      _
    %p286 = scmp.le.s32.totalorder 1, %s15
    %p287 = scmp.lt.s32.totalorder %s15, 3
    %p288 = pnand %p286, %p287
    %p289 = pneg %p288
    // Predicated region
    $region53: #{_lambda_.1} parent=5 // pred_check
      _
    $region54: #{_lambda_.1} parent=5 // pred_check_branch
      %291 = sbr.rel (%p288) target = $region56
    $region55: #{_lambda_.1} parent=5 // pred_region
      %s292 = ssub.s32 %s15, 1
      %p293 = scmp.lt.s32.totalorder %s20, 1
      %s294 = scalar_select %p293, %s20, 1
      %s295 = smul.addr %s294, 8
      %s296 = smul.addr %s295, 4
      %s297 = scalar_lea.vmem %s0, %s296
      %p298 = pneg %p41
      %p299 = pneg %p38
      %p300 = pneg %p62
      %p301 = pneg %p59
      %p302 = pneg %p83
      %p303 = pneg %p80
      %p304 = pneg %p104
      %p305 = pneg %p101
      %p306 = pneg %p125
      %p307 = pneg %p122
      %p308 = pneg %p146
      %p309 = pneg %p143
      %p310 = pneg %p167
      %p311 = pneg %p164
      %p312 = pneg %p188
      %p313 = pneg %p185
      %p314 = pneg %p209
      %p315 = pneg %p206
      %p316 = pneg %p235
      %p317 = pneg %p232
      %p318 = scmp.lt.s32.totalorder %s20, 1
      %s319 = scalar_select %p318, %s20, 1
      %s320 = smul.addr %s319, 8
      %s321 = scalar_lea.vmem %s9, %s320
      %p322 = scmp.lt.s32.totalorder %s20, 1
      %s323 = scalar_select %p322, %s20, 1
      %s324 = smul.addr %s323, 8
      %s325 = smul.addr %s324, 4
      %s326 = scalar_lea.vmem %s0, %s325
      %p327 = scmp.lt.s32.totalorder %s20, 1
      %s328 = scalar_select %p327, %s20, 1
      %s329 = smul.addr %s328, 8
      %s330 = scalar_lea.vmem %s9, %s329
      %v332 = vld [vmem:[%s1] sm:$0xff]
      %v333 = vld [vmem:[%s1 + $0x8] sm:$0x1]
      %v334 = vld [vmem:[%s326] sm:$0xf]
      %v335 = vunpack.c.l.bf16 %v334
      %v336 = vlaneseq
      %v337 = vshrl.u32 %v336, 7
      %v338 = vsub.s32 0, %v337
      %v339 = vrot.slane %v332, %v338
      %v340 = vmul.f32 %v335, %v339
      %v341 = vadd.f32 %v340, 0.0
      %v342 = vlaneseq
      %v343 = vshrl.u32 %v342, 7
      %v344 = vsub.s32 2, %v343
      %v345 = vrot.slane %v332, %v344
      %347 = vrot.lane.b32.xlu0 %v345, 8
      %v348 = vpop.permute.xlu0 %347
      %v350 = vmul.f32 %v335, %v348
      %352 = vrot.lane.b32.xlu0 %v350, 120
      %v353 = vpop.permute.xlu0 %352
      %v355 = vadd.f32 %v341, %v353
      %s356 = scalar_lea.vmem %s326, 8
      %v357 = vld [vmem:[%s356] sm:$0xf]
      %v358 = vunpack.c.l.bf16 %v357
      %v359 = vlaneseq
      %v360 = vshrl.u32 %v359, 7
      %v361 = vsub.s32 1, %v360
      %v362 = vrot.slane %v332, %v361
      %v363 = vmul.f32 %v358, %v362
      %v364 = vadd.f32 %v355, %v363
      %s365 = scalar_lea.vmem %s326, 16
      %v366 = vld [vmem:[%s365] sm:$0xf]
      %v367 = vunpack.c.l.bf16 %v366
      %v368 = vlaneseq
      %v369 = vshrl.u32 %v368, 7
      %v370 = vsub.s32 3, %v369
      %v371 = vrot.slane %v332, %v370
      %v372 = vmul.f32 %v367, %v371
      %v373 = vadd.f32 %v364, %v372
      %v374 = vlaneseq
      %v375 = vshrl.u32 %v374, 7
      %v376 = vsub.s32 5, %v375
      %v377 = vrot.slane %v332, %v376
      %379 = vrot.lane.b32.xlu0 %v377, 8
      %v380 = vpop.permute.xlu0 %379
      %v382 = vmul.f32 %v367, %v380
      %384 = vrot.lane.b32.xlu0 %v382, 120
      %v385 = vpop.permute.xlu0 %384
      %v387 = vadd.f32 %v373, %v385
      %s388 = scalar_lea.vmem %s326, 24
      %v389 = vld [vmem:[%s388] sm:$0xf]
      %v390 = vunpack.c.l.bf16 %v389
      %v391 = vlaneseq
      %v392 = vshrl.u32 %v391, 7
      %v393 = vsub.s32 4, %v392
      %v394 = vrot.slane %v332, %v393
      %v395 = vmul.f32 %v390, %v394
      %v396 = vadd.f32 %v387, %v395
      %v397 = vld [vmem:[%s326 + $0x4] sm:$0x1]
      %v398 = vunpack.c.l.bf16 %v397
      %v399 = vlaneseq
      %v400 = vshrl.u32 %v399, 7
      %v401 = vsub.s32 6, %v400
      %v402 = vrot.slane %v332, %v401
      %v403 = vmul.f32 %v335, %v402
      %v404 = vmul.f32 %v398, %v402
      %vm407 = vcmask 1046528
      %v408 = vrot.slane %v403, 1
      %v409 = vrot.slane %v404, 1
      %v410 = vsel %vm407, %v408, %v409
      %v412 = vadd.f32 %v396, %v410
      %v413 = vlaneseq
      %v414 = vshrl.u32 %v413, 7
      %v415 = vsub.s32 0, %v414
      %v416 = vrot.slane %v333, %v415
      %418 = vrot.lane.b32.xlu0 %v416, 8
      %v419 = vpop.permute.xlu0 %418
      %v421 = vmul.f32 %v335, %v419
      %v422 = vmul.f32 %v398, %v419
      %v425 = vrot.slane %v421, 1
      %v426 = vrot.slane %v422, 1
      %v427 = vsel %vm407, %v425, %v426
      %428 = vrot.lane.b32.xlu0 %v427, 120
      %v429 = vpop.permute.xlu0 %428
      %v431 = vadd.f32 %v412, %v429
      %v432 = vld [vmem:[%s356 + $0x4] sm:$0x1]
      %v433 = vunpack.c.l.bf16 %v432
      %v434 = vlaneseq
      %v435 = vshrl.u32 %v434, 7
      %v436 = vsub.s32 7, %v435
      %v437 = vrot.slane %v332, %v436
      %v438 = vmul.f32 %v358, %v437
      %v439 = vmul.f32 %v433, %v437
      %v442 = vrot.slane %v438, 1
      %v443 = vrot.slane %v439, 1
      %v444 = vsel %vm407, %v442, %v443
      %v446 = vadd.f32 %v431, %v444
      %v447 = vld [vmem:[%s2] sm:$0x1]
      %v449 = vlaneseq
      %v450 = vshrl.u32 %v449, 7
      %v451 = vsub.s32 0, %v450
      %v452 = vrot.slane %v447, %v451
      %v454 = vadd.f32 %v446, %v452
      %vm455 = vcmp.gt.f32.partialorder %v454, 0.0
      %v456 = vmul.f32 %v454, 0.01
      %v457 = vsel %vm455, %v454, %v456
      %vm458 = vcmask 523264
      %v459 = vsel %vm458, %v457, 0.0
      %v460 = vrot.slane %v459, 4
      %v461 = vadd.f32 %v459, %v460
      %v462 = vrot.slane %v461, 2
      %v463 = vadd.f32 %v461, %v462
      %v464 = vrot.slane %v463, 1
      %v465 = vadd.f32 %v463, %v464
      %467 = vrot.lane.b32.xlu0 %v465, 96
      %v468 = vpop.permute.xlu0 %467
      %v470 = vadd.f32 %v465, %v468
      %472 = vrot.lane.b32.xlu0 %v470, 112
      %v473 = vpop.permute.xlu0 %472
      %v475 = vadd.f32 %v470, %v473
      %477 = vrot.lane.b32.xlu0 %v475, 120
      %v478 = vpop.permute.xlu0 %477
      %v480 = vadd.f32 %v475, %v478
      %v481 = vmul.f32 %v480, 0.015625
      %v482 = vld [vmem:[%s3] sm:$0xff]
      %v483 = vld [vmem:[%s4] sm:$0x1]
      %vm484 = vcmask 64512
      %v486 = vsel %vm484, %v481, 0
      %488 = vmatprep.subr.mxu0 0.0
      %489 = vmatpush1.msra.mxu0 %v482
      %490 = vmatprep.subr.mxu0 0.0
      %491 = vmatpush1.msra.mxu0 0.0
      %492 = vmatprep.subr.mxu0 0.0
      %493 = vmatpush1.msra.mxu0 0.0
      %494 = vmatprep.subr.mxu0 0.0
      %495 = vmatpush1.msra.mxu0 0.0
      %496 = vmatprep.subr.mxu0 0.0
      %497 = vmatpush1.msra.mxu0 0.0
      %498 = vmatprep.subr.mxu0 0.0
      %499 = vmatpush1.msra.mxu0 0.0
      %500 = vmatprep.subr.mxu0 0.0
      %501 = vmatpush1.msra.mxu0 0.0
      %502 = vmatprep.subr.mxu0 0.0
      %503 = vmatpush1.msra.mxu0 0.0
      %504 = vmatprep.subr.mxu0 0.0
      %505 = vmatpush1.msra.mxu0 0.0
      %506 = vmatprep.subr.mxu0 0.0
      %507 = vmatpush1.msra.mxu0 0.0
      %508 = vmatprep.subr.mxu0 0.0
      %509 = vmatpush1.msra.mxu0 0.0
      %510 = vmatprep.subr.mxu0 0.0
      %511 = vmatpush1.msra.mxu0 0.0
      %512 = vmatprep.subr.mxu0 0.0
      %513 = vmatpush1.msra.mxu0 0.0
      %514 = vmatprep.subr.mxu0 0.0
      %515 = vmatpush1.msra.mxu0 0.0
      %516 = vmatprep.subr.mxu0 0.0
      %517 = vmatpush1.msra.mxu0 0.0
      %518 = vmatprep.subr.mxu0 0.0
      %519 = vmatpush1.msra.mxu0 0.0
      %520 = vmatprep.subr.mxu0 0.0
      %521 = vmatpush1.msra.mxu0 0.0
      %522 = vmatprep.subr.mxu0 0.0
      %523 = vmatpush1.msra.mxu0 0.0
      %524 = vmatprep.subr.mxu0 0.0
      %525 = vmatpush1.msra.mxu0 0.0
      %526 = vmatprep.subr.mxu0 0.0
      %527 = vmatpush1.msra.mxu0 0.0
      %528 = vmatprep.subr.mxu0 0.0
      %529 = vmatpush1.msra.mxu0 0.0
      %530 = vmatprep.subr.mxu0 0.0
      %531 = vmatpush1.msra.mxu0 0.0
      %532 = vmatprep.subr.mxu0 0.0
      %533 = vmatpush1.msra.mxu0 0.0
      %534 = vmatprep.subr.mxu0 0.0
      %535 = vmatpush1.msra.mxu0 0.0
      %536 = vmatprep.subr.mxu0 0.0
      %537 = vmatpush1.msra.mxu0 0.0
      %538 = vmatprep.subr.mxu0 0.0
      %539 = vmatpush1.msra.mxu0 0.0
      %540 = vmatprep.subr.mxu0 0.0
      %541 = vmatpush1.msra.mxu0 0.0
      %542 = vmatprep.subr.mxu0 0.0
      %543 = vmatpush1.msra.mxu0 0.0
      %544 = vmatprep.subr.mxu0 0.0
      %545 = vmatpush1.msra.mxu0 0.0
      %546 = vmatprep.subr.mxu0 0.0
      %547 = vmatpush1.msra.mxu0 0.0
      %548 = vmatprep.subr.mxu0 0.0
      %549 = vmatpush1.msra.mxu0 0.0
      %550 = vmatprep.subr.mxu0 0.0
      %551 = vmatpush1.msra.mxu0 0.0
      %552 = vmatprep.mubr.f32.mxu0 0.0
      %553 = vmatmul.mubr.f32.gmra.mrb[0].mxu0 %v486
      %v554 = vpop.f32.mrb[0].mxu0
      %v555 = vadd.f32 %v483, %v554
      %v556 = vpop.f32.mrb[0].mxu0
      %557 = vdwg.mxu0
      %v558 = vmax.f32 %v555, 0.0
      %v559 = vld [vmem:[%s5] sm:$0x3]
      %v560 = vld [vmem:[%s6] sm:$0x1]
      %vm561 = vcmask 15360
      %v563 = vsel %vm561, %v558, 0
      %vm565 = vcmask 1041408
      %v567 = vsel %vm565, %v559, 0
      %569 = vmatprep.subr.mxu0 0.0
      %570 = vmatpush1.msra.mxu0 %v567
      %571 = vmatprep.subr.mxu0 0.0
      %572 = vmatpush1.msra.mxu0 0.0
      %573 = vmatprep.subr.mxu0 0.0
      %574 = vmatpush1.msra.mxu0 0.0
      %575 = vmatprep.subr.mxu0 0.0
      %576 = vmatpush1.msra.mxu0 0.0
      %577 = vmatprep.subr.mxu0 0.0
      %578 = vmatpush1.msra.mxu0 0.0
      %579 = vmatprep.subr.mxu0 0.0
      %580 = vmatpush1.msra.mxu0 0.0
      %581 = vmatprep.subr.mxu0 0.0
      %582 = vmatpush1.msra.mxu0 0.0
      %583 = vmatprep.subr.mxu0 0.0
      %584 = vmatpush1.msra.mxu0 0.0
      %585 = vmatprep.subr.mxu0 0.0
      %586 = vmatpush1.msra.mxu0 0.0
      %587 = vmatprep.subr.mxu0 0.0
      %588 = vmatpush1.msra.mxu0 0.0
      %589 = vmatprep.subr.mxu0 0.0
      %590 = vmatpush1.msra.mxu0 0.0
      %591 = vmatprep.subr.mxu0 0.0
      %592 = vmatpush1.msra.mxu0 0.0
      %593 = vmatprep.subr.mxu0 0.0
      %594 = vmatpush1.msra.mxu0 0.0
      %595 = vmatprep.subr.mxu0 0.0
      %596 = vmatpush1.msra.mxu0 0.0
      %597 = vmatprep.subr.mxu0 0.0
      %598 = vmatpush1.msra.mxu0 0.0
      %599 = vmatprep.subr.mxu0 0.0
      %600 = vmatpush1.msra.mxu0 0.0
      %601 = vmatprep.subr.mxu0 0.0
      %602 = vmatpush1.msra.mxu0 0.0
      %603 = vmatprep.subr.mxu0 0.0
      %604 = vmatpush1.msra.mxu0 0.0
      %605 = vmatprep.subr.mxu0 0.0
      %606 = vmatpush1.msra.mxu0 0.0
      %607 = vmatprep.subr.mxu0 0.0
      %608 = vmatpush1.msra.mxu0 0.0
      %609 = vmatprep.subr.mxu0 0.0
      %610 = vmatpush1.msra.mxu0 0.0
      %611 = vmatprep.subr.mxu0 0.0
      %612 = vmatpush1.msra.mxu0 0.0
      %613 = vmatprep.subr.mxu0 0.0
      %614 = vmatpush1.msra.mxu0 0.0
      %615 = vmatprep.subr.mxu0 0.0
      %616 = vmatpush1.msra.mxu0 0.0
      %617 = vmatprep.subr.mxu0 0.0
      %618 = vmatpush1.msra.mxu0 0.0
      %619 = vmatprep.subr.mxu0 0.0
      %620 = vmatpush1.msra.mxu0 0.0
      %621 = vmatprep.subr.mxu0 0.0
      %622 = vmatpush1.msra.mxu0 0.0
      %623 = vmatprep.subr.mxu0 0.0
      %624 = vmatpush1.msra.mxu0 0.0
      %625 = vmatprep.subr.mxu0 0.0
      %626 = vmatpush1.msra.mxu0 0.0
      %627 = vmatprep.subr.mxu0 0.0
      %628 = vmatpush1.msra.mxu0 0.0
      %629 = vmatprep.subr.mxu0 0.0
      %630 = vmatpush1.msra.mxu0 0.0
      %631 = vmatprep.subr.mxu0 0.0
      %632 = vmatpush1.msra.mxu0 0.0
      %633 = vmatprep.mubr.f32.mxu0 0.0
      %634 = vmatmul.mubr.f32.gmra.mrb[0].mxu0 %v563
      %v635 = vpop.f32.mrb[0].mxu0
      %v636 = vadd.f32 %v560, %v635
      %v637 = vpop.f32.mrb[0].mxu0
      %638 = vdwg.mxu0
      %v639 = vadd.f32 %v636, 3.0
      %v640 = vrcp.pop 6.0
      %v641 = vmul.f32 %v639, %v640
      %v642 = vmax.f32 %v641, 0.0
      %v643 = vmin.f32 %v642, 1.0
      %645 = vrot.lane.b32.xlu0 %v643, 8
      %v646 = vpop.permute.xlu0 %645
      %648 = vrot.lane.b32.xlu0 %v643, 16
      %v649 = vpop.permute.xlu0 %648
      %651 = vrot.lane.b32.xlu0 %v643, 24
      %v652 = vpop.permute.xlu0 %651
      %654 = vrot.lane.b32.xlu0 %v643, 32
      %v655 = vpop.permute.xlu0 %654
      %657 = vrot.lane.b32.xlu0 %v643, 40
      %v658 = vpop.permute.xlu0 %657
      %660 = vrot.lane.b32.xlu0 %v643, 48
      %v661 = vpop.permute.xlu0 %660
      %663 = vrot.lane.b32.xlu0 %v643, 56
      %v664 = vpop.permute.xlu0 %663
      %v666 = vsel %vm484, %v643, %v646
      %vm667 = vcmask 130048
      %v668 = vsel %vm667, %v666, %v649
      %vm669 = vcmask 195584
      %v670 = vsel %vm669, %v668, %v652
      %vm671 = vcmask 261120
      %v672 = vsel %vm671, %v670, %v655
      %vm673 = vcmask 326656
      %v674 = vsel %vm673, %v672, %v658
      %vm675 = vcmask 392192
      %v676 = vsel %vm675, %v674, %v661
      %vm677 = vcmask 457728
      %v678 = vsel %vm677, %v676, %v664
      %v679 = vlaneseq
      %v680 = vshrl.u32 %v679, 7
      %v681 = vsub.s32 0, %v680
      %v682 = vrot.slane %v678, %v681
      %v683 = vmul.f32 %v457, %v682
      %v684 = vld [vmem:[%s7] sm:$0xf]
      %v685 = vld [vmem:[%s7 + $0x4] sm:$0xf]
      %v686 = vld [vmem:[%s7 + $0x8] sm:$0xf]
      %v687 = vld [vmem:[%s7 + $0xc] sm:$0xf]
      %v688 = vld [vmem:[%s7 + $0x10] sm:$0xf]
      %v689 = vld [vmem:[%s7 + $0x14] sm:$0xf]
      %v690 = vld [vmem:[%s7 + $0x18] sm:$0xf]
      %v691 = vld [vmem:[%s7 + $0x1c] sm:$0xf]
      %v692 = vpack.c.bf16 %v683, %v683
      %v693 = vld [vmem:[%s8] sm:$0x1]
      %v695 = vlaneseq
      %v696 = vshrl.u32 %v695, 7
      %v697 = vsub.s32 0, %v696
      %v698 = vrot.slane %v693, %v697
      %v708 = vunpack.c.l.b16 %v684
      %v709 = vunpack.c.l.b16 %v685
      %v710 = vunpack.c.l.b16 %v686
      %v711 = vunpack.c.l.b16 %v687
      %v712 = vunpack.c.l.b16 %v688
      %v713 = vunpack.c.l.b16 %v689
      %v714 = vunpack.c.l.b16 %v690
      %v715 = vunpack.c.l.b16 %v691
      %v716 = vpack.c.b16 %v709, %v708
      %v717 = vpack.c.b16 %v711, %v710
      %v718 = vpack.c.b16 %v713, %v712
      %v719 = vpack.c.b16 %v715, %v714
      %v725 = vsel %vm458, %v692, 0
      %727 = vmatprep.subr.bf16.mxu0 0
      %728 = vmatpush1.bf16.msra.mxu0 %v716
      %729 = vmatprep.subr.bf16.mxu0 0
      %730 = vmatpush1.bf16.msra.mxu0 %v717
      %731 = vmatprep.subr.bf16.mxu0 0
      %732 = vmatpush1.bf16.msra.mxu0 %v718
      %733 = vmatprep.subr.bf16.mxu0 0
      %734 = vmatpush1.bf16.msra.mxu0 %v719
      %735 = vmatprep.subr.bf16.mxu0 0
      %736 = vmatpush1.bf16.msra.mxu0 0
      %737 = vmatprep.subr.bf16.mxu0 0
      %738 = vmatpush1.bf16.msra.mxu0 0
      %739 = vmatprep.subr.bf16.mxu0 0
      %740 = vmatpush1.bf16.msra.mxu0 0
      %741 = vmatprep.subr.bf16.mxu0 0
      %742 = vmatpush1.bf16.msra.mxu0 0
      %743 = vmatprep.subr.bf16.mxu0 0
      %744 = vmatpush1.bf16.msra.mxu0 0
      %745 = vmatprep.subr.bf16.mxu0 0
      %746 = vmatpush1.bf16.msra.mxu0 0
      %747 = vmatprep.subr.bf16.mxu0 0
      %748 = vmatpush1.bf16.msra.mxu0 0
      %749 = vmatprep.subr.bf16.mxu0 0
      %750 = vmatpush1.bf16.msra.mxu0 0
      %751 = vmatprep.subr.bf16.mxu0 0
      %752 = vmatpush1.bf16.msra.mxu0 0
      %753 = vmatprep.subr.bf16.mxu0 0
      %754 = vmatpush1.bf16.msra.mxu0 0
      %755 = vmatprep.subr.bf16.mxu0 0
      %756 = vmatpush1.bf16.msra.mxu0 0
      %757 = vmatprep.subr.bf16.mxu0 0
      %758 = vmatpush1.bf16.msra.mxu0 0
      %759 = vmatprep.mubr.bf16.mxu0 0
      %760 = vmatmul.mubr.bf16.gmra.mrb[0].mxu0 %v725
      %v761 = vpop.f32.mrb[0].mxu0
      %v762 = vadd.f32 %v698, %v761
      %v763 = vpop.f32.mrb[0].mxu0
      %v764 = vpop.f32.mrb[0].mxu0
      %v765 = vpop.f32.mrb[0].mxu0
      %766 = vdwg.mxu0
      %vm767 = vcmp.gt.f32.partialorder %v762, 0.0
      %v768 = vmul.f32 %v762, 0.01
      %v769 = vsel %vm767, %v762, %v768
      %770 = vst [vmem:[%s330] sm:$0xff] %v769
      %p771 = scmp.lt.s32.totalorder %s20, 1
      %s772 = scalar_select %p771, %s20, 1
      %s773 = smul.addr %s772, 8
      %s774 = scalar_lea.vmem %s9, %s773
      // Predicated region
      $region57: #{_lambda_.1} parent=55 // pred_check
        %p775 = pneg %p232
      $region58: #{_lambda_.1} parent=55 // pred_check_branch
        %777 = sbr.rel (%p775) target = $region60
      $region59: #{_lambda_.1} parent=55 // pred_region
        _
      $region60: #{_lambda_.1} parent=55 // pred_fallthru
        _
    $region56: #{_lambda_.1} parent=5 // pred_fallthru
      _
    %p778 = scmp.le.s32.totalorder 2, %s15
    // Predicated region
    $region61: #{_lambda_.1} parent=5 // pred_check
      %p779 = pneg %p778
    $region62: #{_lambda_.1} parent=5 // pred_check_branch
      %781 = sbr.rel (%p779) target = $region64
    $region63: #{_lambda_.1} parent=5 // pred_region
      %s782 = ssub.s32 %s15, 2
      // Predicated region
      $region65: #{_lambda_.1} parent=63 // pred_check
        %p783 = pneg %p238
      $region66: #{_lambda_.1} parent=63 // pred_check_branch
        %785 = sbr.rel (%p783) target = $region68
      $region67: #{_lambda_.1} parent=63 // pred_region
        %p786 = scmp.lt.s32.totalorder %s21, 1
        %s787 = scalar_select %p786, %s21, 1
        %s788 = smul.addr %s787, 8
        %s789 = scalar_lea.vmem %s9, %s788
      $region68: #{_lambda_.1} parent=63 // pred_fallthru
        _
    $region64: #{_lambda_.1} parent=5 // pred_fallthru
      _
  $region6: #{_lambda_.1} parent=0 // loop_footer
    %s19 = sadd.s32 1, %s15
  $region7: #{_lambda_.1} parent=0 // loop_footer_branch
    %14 = sbr.rel target = $region3
  $region8: #{_lambda_.1} parent=0 // loop_exit
    _

</llo_original>
